<compile_context>
chip_gen: v7x
topology: tpu7x:2x2x1
jax: 0.10.0
libtpu: 0.0.40
codegen_flags: <defaults>
</compile_context>

<pallas_src>
import functools
import math

import jax
import jax.numpy as jnp
from jax import lax
from jax.experimental import pallas as pl
from jax.experimental.pallas import tpu as pltpu

_SELU_SCALE = 1.0507009873554805
_SELU_ALPHA = 1.6732632423543772


def _selu(x):
    return _SELU_SCALE * jnp.where(x > 0, x, _SELU_ALPHA * (jnp.exp(x) - 1.0))


def densestack_kernel(*refs, num_layers, sub):
    """refs = (x_ref, w0, b0, w1, b1, ..., w_{L-1}, b_{L-1}, out_ref).

    x_ref  : (tile_n, in_dim)   row-major input block (as stored in HBM).
    w_l    : (out_l, in_l)      PyTorch nn.Linear layout, VMEM resident.
    b_l    : (out_l, 1)         bias column, VMEM resident.
    out_ref: (out_dim, tile_n)  feature-major output block (lane-dense).
    """
    x_ref = refs[0]
    out_ref = refs[-1]
    wb = refs[1:-1]

    tile_n = x_ref.shape[0]
    num_sub = tile_n // sub

    # Static sub-chunk loop: each chunk is fully independent (reads x_ref,
    # writes its own out_ref slice), so live ranges stay ~16-26 vregs and the
    # compiler never has to spill the (hid, tile_n) intermediate.
    for c in range(num_sub):
        start = c * sub
        x_sub = x_ref[pl.ds(start, sub), :].astype(jnp.float32)     # (sub, in)
        w0 = wb[0][...]
        b0 = wb[1][...]
        # First layer fuses the row->lane transpose into the MXU contraction:
        # result[o, s] = sum_i w0[o, i] * x_sub[s, i]   -> (out0, sub)
        h = lax.dot_general(
            w0, x_sub,
            dimension_numbers=(((1,), (1,)), ((), ())),
            preferred_element_type=jnp.float32,
        ) + b0
        if num_layers > 1:
            h = _selu(h)
        for l in range(1, num_layers):
            w = wb[2 * l][...]
            b = wb[2 * l + 1][...]
            h = jnp.dot(w, h, preferred_element_type=jnp.float32) + b
            if l < num_layers - 1:     # final GeneralLinear has no activation
                h = _selu(h)
        out_ref[:, pl.ds(start, sub)] = h.astype(out_ref.dtype)


def _choose_tile(n_rows):
    """Largest row tile (<=4096) that still leaves >= 2 grid steps."""
    for t in (4096, 2048, 1024, 512, 256, 128):
        if n_rows >= 2 * t:
            return t
    return 128


def dense_stack(x, weights, biases):
    """DenseStack forward.

    x: (..., input_dim).  weights[l]: (out_l, in_l) PyTorch layout.
    biases[l]: (out_l,).  Returns (..., out_dim).
    """
    in_dim = x.shape[-1]
    lead = x.shape[:-1]
    n = math.prod(lead) if lead else 1
    out_dim = weights[-1].shape[0]
    num_layers = len(weights)

    tile_n = _choose_tile(n)
    sub = min(512, tile_n)                 # in-kernel column chunk (vreg bound)
    n_pad = pl.cdiv(n, tile_n) * tile_n
    grid = (n_pad // tile_n,)

    x2 = x.reshape(n, in_dim).astype(jnp.float32)
    if n_pad != n:
        # Zero rows are harmless through Linear+SELU; sliced off below.
        x2 = jnp.pad(x2, ((0, n_pad - n), (0, 0)))

    ws = [w.astype(jnp.float32) for w in weights]            # keep (out, in)
    bs = [b.reshape(-1, 1).astype(jnp.float32) for b in biases]

    in_specs = [pl.BlockSpec((tile_n, in_dim), lambda i: (i, 0))]
    operands = [x2]
    for w, b in zip(ws, bs):
        in_specs.append(pl.BlockSpec(w.shape, lambda i: (0, 0)))  # resident
        in_specs.append(pl.BlockSpec(b.shape, lambda i: (0, 0)))  # resident
        operands.extend([w, b])

    out_fm = pl.pallas_call(
        functools.partial(densestack_kernel, num_layers=num_layers, sub=sub),
        out_shape=jax.ShapeDtypeStruct((out_dim, n_pad), jnp.float32),
        grid=grid,
        in_specs=in_specs,
        out_specs=pl.BlockSpec((out_dim, tile_n), lambda i: (0, i)),
        compiler_params=pltpu.CompilerParams(
            dimension_semantics=("parallel",),
            # Worst case (tile 4096): 2 x 4096x128-lane-padded x-tile buffers
            # (~4 MiB) + output tiles + weights << 32 MiB, safe on v5e/v6e/v7x.
            vmem_limit_bytes=32 * 1024 * 1024,
        ),
    )(*operands)

    out = jnp.transpose(out_fm)[:n]        # (n, out_dim); drop padded rows
    return out.reshape(*lead, out_dim)


def dense_stack_ref(x, weights, biases):
    """Pure-JAX reference mirroring the PyTorch forward."""
    lead = x.shape[:-1]
    h = x.reshape(-1, x.shape[-1]).astype(jnp.float32)
    L = len(weights)
    for l in range(L):
        h = h @ weights[l].T.astype(jnp.float32) + biases[l].astype(jnp.float32)
        if l < L - 1:
            h = _selu(h)
    return h.reshape(*lead, weights[-1].shape[0])


if __name__ == "__main__":
    # Module config: DenseStack(input_dim=16, hid_dim=32, out_dim=8, depth=2,
    #                           activ='selu'); input (B, S, input_dim).
    B, S = 2, 128  # GeneralLinear flattens to N = B*S = 256 rows -> grid=(2,)
    input_dim, hid_dim, out_dim, depth = 16, 32, 8, 2

    key = jax.random.PRNGKey(0)
    k_x, key = jax.random.split(key)
    x = jax.random.normal(k_x, (B, S, input_dim), jnp.float32)

    # PyTorch nn.Linear default init: U(-1/sqrt(fan_in), 1/sqrt(fan_in)).
    dims = [input_dim, hid_dim] + [hid_dim] * depth + [out_dim]
    weights, biases = [], []
    for l in range(len(dims) - 1):
        fan_in, fan_out = dims[l], dims[l + 1]
        key, kw, kb = jax.random.split(key, 3)
        bound = 1.0 / math.sqrt(fan_in)
        weights.append(
            jax.random.uniform(kw, (fan_out, fan_in), jnp.float32, -bound, bound))
        biases.append(
            jax.random.uniform(kb, (fan_out,), jnp.float32, -bound, bound))

    y = dense_stack(x, weights, biases)
    y = jax.block_until_ready(y)
    y_ref = dense_stack_ref(x, weights, biases)

    assert y.shape == (B, S, out_dim)
    assert jnp.allclose(y, y_ref, rtol=1e-4, atol=1e-4), "mismatch vs reference"
    print("KERNEL_OK")
</pallas_src>

<mosaic_0001>
module attributes {stable_mosaic.version = 11 : i64} {
  func.func @densestack_kernel(%arg0: i32, %arg1: memref<128x16xf32, #tpu.memory_space<vmem>>, %arg2: memref<32x16xf32, #tpu.memory_space<vmem>>, %arg3: memref<32x1xf32, #tpu.memory_space<vmem>>, %arg4: memref<32x32xf32, #tpu.memory_space<vmem>>, %arg5: memref<32x1xf32, #tpu.memory_space<vmem>>, %arg6: memref<32x32xf32, #tpu.memory_space<vmem>>, %arg7: memref<32x1xf32, #tpu.memory_space<vmem>>, %arg8: memref<8x32xf32, #tpu.memory_space<vmem>>, %arg9: memref<8x1xf32, #tpu.memory_space<vmem>>, %arg10: memref<8x128xf32, #tpu.memory_space<vmem>>) attributes {dimension_semantics = [#tpu.dimension_semantics<parallel>], iteration_bounds = array<i64: 2>, scalar_prefetch = 0 : i64, scratch_operands = 0 : i64, tpu.core_type = #tpu.core_type<tc>, window_params = [{transform_indices = @transform_0, window_bounds = array<i64: 128, 16>}, {pipeline_mode = #tpu.pipeline_mode<synchronous>, transform_indices = @transform_1, window_bounds = array<i64: 32, 16>}, {pipeline_mode = #tpu.pipeline_mode<synchronous>, transform_indices = @transform_2, window_bounds = array<i64: 32, 1>}, {pipeline_mode = #tpu.pipeline_mode<synchronous>, transform_indices = @transform_3, window_bounds = array<i64: 32, 32>}, {pipeline_mode = #tpu.pipeline_mode<synchronous>, transform_indices = @transform_4, window_bounds = array<i64: 32, 1>}, {pipeline_mode = #tpu.pipeline_mode<synchronous>, transform_indices = @transform_5, window_bounds = array<i64: 32, 32>}, {pipeline_mode = #tpu.pipeline_mode<synchronous>, transform_indices = @transform_6, window_bounds = array<i64: 32, 1>}, {pipeline_mode = #tpu.pipeline_mode<synchronous>, transform_indices = @transform_7, window_bounds = array<i64: 8, 32>}, {pipeline_mode = #tpu.pipeline_mode<synchronous>, transform_indices = @transform_8, window_bounds = array<i64: 8, 1>}, {transform_indices = @transform_9, window_bounds = array<i64: 8, 128>}]} {
    %c0 = arith.constant 0 : index
    %c0_0 = arith.constant 0 : index
    %0 = vector.load %arg1[%c0, %c0_0] : memref<128x16xf32, #tpu.memory_space<vmem>>, vector<128x16xf32>
    %c0_1 = arith.constant 0 : index
    %c0_2 = arith.constant 0 : index
    %1 = vector.load %arg2[%c0_1, %c0_2] : memref<32x16xf32, #tpu.memory_space<vmem>>, vector<32x16xf32>
    %c0_3 = arith.constant 0 : index
    %c0_4 = arith.constant 0 : index
    %2 = vector.load %arg3[%c0_3, %c0_4] : memref<32x1xf32, #tpu.memory_space<vmem>>, vector<32x1xf32>
    %cst = arith.constant dense<0.000000e+00> : vector<32x128xf32>
    %3 = tpu.matmul %1, %0, %cst {dimension_numbers = #tpu.dot_dimension_numbers<[1], [1], [0], [0], [0, 0, 1, 0], [], []>} : vector<32x16xf32>, vector<128x16xf32>, vector<32x128xf32> -> vector<32x128xf32>
    %4 = vector.broadcast %2 : vector<32x1xf32> to vector<32x128xf32>
    %5 = arith.addf %3, %4 : vector<32x128xf32>
    %cst_5 = arith.constant 0.000000e+00 : f32
    %6 = vector.broadcast %cst_5 : f32 to vector<32x128xf32>
    %7 = arith.cmpf ogt, %5, %6 : vector<32x128xf32>
    %8 = math.exp %5 : vector<32x128xf32>
    %cst_6 = arith.constant 1.000000e+00 : f32
    %9 = vector.broadcast %cst_6 : f32 to vector<32x128xf32>
    %10 = arith.subf %8, %9 : vector<32x128xf32>
    %cst_7 = arith.constant 1.67326319 : f32
    %11 = vector.broadcast %cst_7 : f32 to vector<32x128xf32>
    %12 = arith.mulf %11, %10 : vector<32x128xf32>
    %13 = arith.select %7, %5, %12 : vector<32x128xi1>, vector<32x128xf32>
    %cst_8 = arith.constant 1.05070102 : f32
    %14 = vector.broadcast %cst_8 : f32 to vector<32x128xf32>
    %15 = arith.mulf %14, %13 : vector<32x128xf32>
    %c0_9 = arith.constant 0 : index
    %c0_10 = arith.constant 0 : index
    %16 = vector.load %arg4[%c0_9, %c0_10] : memref<32x32xf32, #tpu.memory_space<vmem>>, vector<32x32xf32>
    %c0_11 = arith.constant 0 : index
    %c0_12 = arith.constant 0 : index
    %17 = vector.load %arg5[%c0_11, %c0_12] : memref<32x1xf32, #tpu.memory_space<vmem>>, vector<32x1xf32>
    %cst_13 = arith.constant dense<0.000000e+00> : vector<32x128xf32>
    %18 = tpu.matmul %16, %15, %cst_13 {dimension_numbers = #tpu.dot_dimension_numbers<[1], [0], [0], [1], [0, 0, 1, 1], [], []>} : vector<32x32xf32>, vector<32x128xf32>, vector<32x128xf32> -> vector<32x128xf32>
    %19 = vector.broadcast %17 : vector<32x1xf32> to vector<32x128xf32>
    %20 = arith.addf %18, %19 : vector<32x128xf32>
    %cst_14 = arith.constant 0.000000e+00 : f32
    %21 = vector.broadcast %cst_14 : f32 to vector<32x128xf32>
    %22 = arith.cmpf ogt, %20, %21 : vector<32x128xf32>
    %23 = math.exp %20 : vector<32x128xf32>
    %cst_15 = arith.constant 1.000000e+00 : f32
    %24 = vector.broadcast %cst_15 : f32 to vector<32x128xf32>
    %25 = arith.subf %23, %24 : vector<32x128xf32>
    %cst_16 = arith.constant 1.67326319 : f32
    %26 = vector.broadcast %cst_16 : f32 to vector<32x128xf32>
    %27 = arith.mulf %26, %25 : vector<32x128xf32>
    %28 = arith.select %22, %20, %27 : vector<32x128xi1>, vector<32x128xf32>
    %cst_17 = arith.constant 1.05070102 : f32
    %29 = vector.broadcast %cst_17 : f32 to vector<32x128xf32>
    %30 = arith.mulf %29, %28 : vector<32x128xf32>
    %c0_18 = arith.constant 0 : index
    %c0_19 = arith.constant 0 : index
    %31 = vector.load %arg6[%c0_18, %c0_19] : memref<32x32xf32, #tpu.memory_space<vmem>>, vector<32x32xf32>
    %c0_20 = arith.constant 0 : index
    %c0_21 = arith.constant 0 : index
    %32 = vector.load %arg7[%c0_20, %c0_21] : memref<32x1xf32, #tpu.memory_space<vmem>>, vector<32x1xf32>
    %cst_22 = arith.constant dense<0.000000e+00> : vector<32x128xf32>
    %33 = tpu.matmul %31, %30, %cst_22 {dimension_numbers = #tpu.dot_dimension_numbers<[1], [0], [0], [1], [0, 0, 1, 1], [], []>} : vector<32x32xf32>, vector<32x128xf32>, vector<32x128xf32> -> vector<32x128xf32>
    %34 = vector.broadcast %32 : vector<32x1xf32> to vector<32x128xf32>
    %35 = arith.addf %33, %34 : vector<32x128xf32>
    %cst_23 = arith.constant 0.000000e+00 : f32
    %36 = vector.broadcast %cst_23 : f32 to vector<32x128xf32>
    %37 = arith.cmpf ogt, %35, %36 : vector<32x128xf32>
    %38 = math.exp %35 : vector<32x128xf32>
    %cst_24 = arith.constant 1.000000e+00 : f32
    %39 = vector.broadcast %cst_24 : f32 to vector<32x128xf32>
    %40 = arith.subf %38, %39 : vector<32x128xf32>
    %cst_25 = arith.constant 1.67326319 : f32
    %41 = vector.broadcast %cst_25 : f32 to vector<32x128xf32>
    %42 = arith.mulf %41, %40 : vector<32x128xf32>
    %43 = arith.select %37, %35, %42 : vector<32x128xi1>, vector<32x128xf32>
    %cst_26 = arith.constant 1.05070102 : f32
    %44 = vector.broadcast %cst_26 : f32 to vector<32x128xf32>
    %45 = arith.mulf %44, %43 : vector<32x128xf32>
    %c0_27 = arith.constant 0 : index
    %c0_28 = arith.constant 0 : index
    %46 = vector.load %arg8[%c0_27, %c0_28] : memref<8x32xf32, #tpu.memory_space<vmem>>, vector<8x32xf32>
    %c0_29 = arith.constant 0 : index
    %c0_30 = arith.constant 0 : index
    %47 = vector.load %arg9[%c0_29, %c0_30] : memref<8x1xf32, #tpu.memory_space<vmem>>, vector<8x1xf32>
    %cst_31 = arith.constant dense<0.000000e+00> : vector<8x128xf32>
    %48 = tpu.matmul %46, %45, %cst_31 {dimension_numbers = #tpu.dot_dimension_numbers<[1], [0], [0], [1], [0, 0, 1, 1], [], []>} : vector<8x32xf32>, vector<32x128xf32>, vector<8x128xf32> -> vector<8x128xf32>
    %49 = vector.broadcast %47 : vector<8x1xf32> to vector<8x128xf32>
    %50 = arith.addf %48, %49 : vector<8x128xf32>
    %c0_32 = arith.constant 0 : index
    %c0_33 = arith.constant 0 : index
    %51 = vector.load %arg10[%c0_32, %c0_33] : memref<8x128xf32, #tpu.memory_space<vmem>>, vector<8x128xf32>
    tpu.vector_store %arg10[%c0_32, %c0_33], %50 {strides = array<i32>} : memref<8x128xf32, #tpu.memory_space<vmem>>, vector<8x128xf32>,
    return
  }
  func.func @transform_0(%arg0: i32) -> (i32, i32) {
    %c0_i32 = arith.constant 0 : i32
    %c0_i32_0 = arith.constant 0 : i32
    return %arg0, %c0_i32 : i32, i32
  }
  func.func @transform_1(%arg0: i32) -> (i32, i32) {
    %c0_i32 = arith.constant 0 : i32
    %c0_i32_0 = arith.constant 0 : i32
    %c0_i32_1 = arith.constant 0 : i32
    return %c0_i32, %c0_i32_0 : i32, i32
  }
  func.func @transform_2(%arg0: i32) -> (i32, i32) {
    %c0_i32 = arith.constant 0 : i32
    %c0_i32_0 = arith.constant 0 : i32
    %c0_i32_1 = arith.constant 0 : i32
    return %c0_i32, %c0_i32_0 : i32, i32
  }
  func.func @transform_3(%arg0: i32) -> (i32, i32) {
    %c0_i32 = arith.constant 0 : i32
    %c0_i32_0 = arith.constant 0 : i32
    %c0_i32_1 = arith.constant 0 : i32
    return %c0_i32, %c0_i32_0 : i32, i32
  }
  func.func @transform_4(%arg0: i32) -> (i32, i32) {
    %c0_i32 = arith.constant 0 : i32
    %c0_i32_0 = arith.constant 0 : i32
    %c0_i32_1 = arith.constant 0 : i32
    return %c0_i32, %c0_i32_0 : i32, i32
  }
  func.func @transform_5(%arg0: i32) -> (i32, i32) {
    %c0_i32 = arith.constant 0 : i32
    %c0_i32_0 = arith.constant 0 : i32
    %c0_i32_1 = arith.constant 0 : i32
    return %c0_i32, %c0_i32_0 : i32, i32
  }
  func.func @transform_6(%arg0: i32) -> (i32, i32) {
    %c0_i32 = arith.constant 0 : i32
    %c0_i32_0 = arith.constant 0 : i32
    %c0_i32_1 = arith.constant 0 : i32
    return %c0_i32, %c0_i32_0 : i32, i32
  }
  func.func @transform_7(%arg0: i32) -> (i32, i32) {
    %c0_i32 = arith.constant 0 : i32
    %c0_i32_0 = arith.constant 0 : i32
    %c0_i32_1 = arith.constant 0 : i32
    return %c0_i32, %c0_i32_0 : i32, i32
  }
  func.func @transform_8(%arg0: i32) -> (i32, i32) {
    %c0_i32 = arith.constant 0 : i32
    %c0_i32_0 = arith.constant 0 : i32
    %c0_i32_1 = arith.constant 0 : i32
    return %c0_i32, %c0_i32_0 : i32, i32
  }
  func.func @transform_9(%arg0: i32) -> (i32, i32) {
    %c0_i32 = arith.constant 0 : i32
    %c0_i32_0 = arith.constant 0 : i32
    return %c0_i32, %arg0 : i32, i32
  }
}

</mosaic_0001>

<llo_original>
// kernel: tpu_custom_call.1
$region0: #{tpu_custom_call.1}
  #allocation0 [shape = 'u32[]', space=smem, size = 0x4, offset = 0x4, fixed_abs, tag = 'smem constant byte address 0x4 - core index']
  #allocation1 [shape = 'u32[144,128]{1,0:T(1,128)}', space=vmem, size = 0x12000, scoped, tag = 'internal scratch']
  %s0 = inlined_call_operand.vmem [shape: f32[256,16], index: 0, kind: input, shape index: {}]
  %s1 = inlined_call_operand.vmem [shape: f32[32,16], index: 1, kind: input, shape index: {}]
  %s2 = inlined_call_operand.vmem [shape: f32[32,1], index: 2, kind: input, shape index: {}]
  %s3 = inlined_call_operand.vmem [shape: f32[32,32], index: 3, kind: input, shape index: {}]
  %s4 = inlined_call_operand.vmem [shape: f32[32,1], index: 4, kind: input, shape index: {}]
  %s5 = inlined_call_operand.vmem [shape: f32[32,32], index: 5, kind: input, shape index: {}]
  %s6 = inlined_call_operand.vmem [shape: f32[32,1], index: 6, kind: input, shape index: {}]
  %s7 = inlined_call_operand.vmem [shape: f32[8,32], index: 7, kind: input, shape index: {}]
  %s8 = inlined_call_operand.vmem [shape: f32[8,1], index: 8, kind: input, shape index: {}]
  %s9 = inlined_call_operand.hbm [shape: f32[8,256], index: 9, kind: output, shape index: {}]
  %s10 = sld [smem:[#allocation0]]
  $region69: #{tpu_custom_call.1} parent=0
    _
  %s12 = ssub.s32 1, %s10
  %s13 = scalar_select 0, %s12, %s10
  $region1: #{tpu_custom_call.1} parent=0
    #allocation2 [shape = 'u8[8192]{0}', space=vmem, size = 0x2000, scoped, tag = 'output window, operand 0']
    #allocation3 [shape = 's32[2]{0}', space=sflag, size = 0x8, scoped, tag = 'scoped memory for tpu_custom_call.1']
    %14 = vsyncpa [#allocation3], 0
    %s15 = scalar_lea.sflag [#allocation3], 1
    %16 = vsyncpa %s15, 0
    loop: start=0, step=1, limit=4
    $region2: #{tpu_custom_call.1} parent=1 // loop_pre_header
      _
    $region3: #{tpu_custom_call.1} parent=1 // loop_header
      %s18 = sphi 0, %s22
      %p19 = scmp.ge.s32.totalorder %s18, 4
      %s28 = sphi 0, %s30
      %s31 = sphi 0, %s28
      %s32 = sphi 0, %s31
      %s48 = sphi 0, %s32
      %s52 = sphi 0, %s52
      %s54 = sphi 0, %s52
      %s55 = sphi 0, %s54
      %s69 = sphi 0, %s55
      %s73 = sphi 0, %s73
      %s75 = sphi 0, %s73
      %s76 = sphi 0, %s75
      %s90 = sphi 0, %s76
      %s94 = sphi 0, %s94
      %s96 = sphi 0, %s94
      %s97 = sphi 0, %s96
      %s111 = sphi 0, %s97
      %s115 = sphi 0, %s115
      %s117 = sphi 0, %s115
      %s118 = sphi 0, %s117
      %s132 = sphi 0, %s118
      %s136 = sphi 0, %s136
      %s138 = sphi 0, %s136
      %s139 = sphi 0, %s138
      %s153 = sphi 0, %s139
      %s157 = sphi 0, %s157
      %s159 = sphi 0, %s157
      %s160 = sphi 0, %s159
      %s174 = sphi 0, %s160
      %s178 = sphi 0, %s178
      %s180 = sphi 0, %s178
      %s181 = sphi 0, %s180
      %s195 = sphi 0, %s181
      %s199 = sphi 0, %s199
      %s201 = sphi 0, %s199
      %s202 = sphi 0, %s201
      %s216 = sphi 0, %s202
      %s222 = sphi 0, %s224
      %s225 = sphi 0, %s222
      %s226 = sphi 0, %s225
      %s242 = sphi 0, %s226
    $region4: #{tpu_custom_call.1} parent=1 // loop_header_branch
      %21 = sbr.rel (%p19) target = $region8
    $region5: #{tpu_custom_call.1} parent=1 // loop_body
      %s23 = ssub.s32 %s18, 1
      %s24 = ssub.s32 %s18, 2
      %s25 = sadd.s32 %s18, 1
      %s26 = ssub.s32 %s18, %s25
      %p27 = scmp.eq.s32.totalorder %s26, 0
      %s29 = sadd.s32 %s28, 1
      %s30 = scalar_select %p27, %s28, %s29
      %p33 = pneg %p27
      %p34 = scmp.eq.s32.totalorder %s18, 1
      %p35 = por %p33, %p34
      %p36 = scmp.ne.s32.totalorder %s28, %s31
      %p37 = scmp.eq.s32.totalorder %s18, 0
      %p38 = por %p36, %p37
      %p39 = scmp.ne.s32.totalorder %s28, %s31
      %p40 = scmp.eq.s32.totalorder %s23, 1
      %p41 = por %p39, %p40
      %p42 = scmp.ne.s32.totalorder %s31, %s32
      %p43 = scmp.eq.s32.totalorder %s23, 0
      %p44 = por %p42, %p43
      %p45 = scmp.ne.s32.totalorder %s31, %s32
      %p46 = scmp.eq.s32.totalorder %s24, 1
      %p47 = por %p45, %p46
      %p49 = scmp.ne.s32.totalorder %s32, %s48
      %p50 = scmp.eq.s32.totalorder %s24, 0
      %p51 = por %p49, %p50
      %s53 = sadd.s32 %s52, 1
      %p56 = scmp.eq.s32.totalorder %s18, 1
      %p57 = scmp.ne.s32.totalorder %s52, %s54
      %p58 = scmp.eq.s32.totalorder %s18, 0
      %p59 = por %p57, %p58
      %p60 = scmp.ne.s32.totalorder %s52, %s54
      %p61 = scmp.eq.s32.totalorder %s23, 1
      %p62 = por %p60, %p61
      %p63 = scmp.ne.s32.totalorder %s54, %s55
      %p64 = scmp.eq.s32.totalorder %s23, 0
      %p65 = por %p63, %p64
      %p66 = scmp.ne.s32.totalorder %s54, %s55
      %p67 = scmp.eq.s32.totalorder %s24, 1
      %p68 = por %p66, %p67
      %p70 = scmp.ne.s32.totalorder %s55, %s69
      %p71 = scmp.eq.s32.totalorder %s24, 0
      %p72 = por %p70, %p71
      %s74 = sadd.s32 %s73, 1
      %p77 = scmp.eq.s32.totalorder %s18, 1
      %p78 = scmp.ne.s32.totalorder %s73, %s75
      %p79 = scmp.eq.s32.totalorder %s18, 0
      %p80 = por %p78, %p79
      %p81 = scmp.ne.s32.totalorder %s73, %s75
      %p82 = scmp.eq.s32.totalorder %s23, 1
      %p83 = por %p81, %p82
      %p84 = scmp.ne.s32.totalorder %s75, %s76
      %p85 = scmp.eq.s32.totalorder %s23, 0
      %p86 = por %p84, %p85
      %p87 = scmp.ne.s32.totalorder %s75, %s76
      %p88 = scmp.eq.s32.totalorder %s24, 1
      %p89 = por %p87, %p88
      %p91 = scmp.ne.s32.totalorder %s76, %s90
      %p92 = scmp.eq.s32.totalorder %s24, 0
      %p93 = por %p91, %p92
      %s95 = sadd.s32 %s94, 1
      %p98 = scmp.eq.s32.totalorder %s18, 1
      %p99 = scmp.ne.s32.totalorder %s94, %s96
      %p100 = scmp.eq.s32.totalorder %s18, 0
      %p101 = por %p99, %p100
      %p102 = scmp.ne.s32.totalorder %s94, %s96
      %p103 = scmp.eq.s32.totalorder %s23, 1
      %p104 = por %p102, %p103
      %p105 = scmp.ne.s32.totalorder %s96, %s97
      %p106 = scmp.eq.s32.totalorder %s23, 0
      %p107 = por %p105, %p106
      %p108 = scmp.ne.s32.totalorder %s96, %s97
      %p109 = scmp.eq.s32.totalorder %s24, 1
      %p110 = por %p108, %p109
      %p112 = scmp.ne.s32.totalorder %s97, %s111
      %p113 = scmp.eq.s32.totalorder %s24, 0
      %p114 = por %p112, %p113
      %s116 = sadd.s32 %s115, 1
      %p119 = scmp.eq.s32.totalorder %s18, 1
      %p120 = scmp.ne.s32.totalorder %s115, %s117
      %p121 = scmp.eq.s32.totalorder %s18, 0
      %p122 = por %p120, %p121
      %p123 = scmp.ne.s32.totalorder %s115, %s117
      %p124 = scmp.eq.s32.totalorder %s23, 1
      %p125 = por %p123, %p124
      %p126 = scmp.ne.s32.totalorder %s117, %s118
      %p127 = scmp.eq.s32.totalorder %s23, 0
      %p128 = por %p126, %p127
      %p129 = scmp.ne.s32.totalorder %s117, %s118
      %p130 = scmp.eq.s32.totalorder %s24, 1
      %p131 = por %p129, %p130
      %p133 = scmp.ne.s32.totalorder %s118, %s132
      %p134 = scmp.eq.s32.totalorder %s24, 0
      %p135 = por %p133, %p134
      %s137 = sadd.s32 %s136, 1
      %p140 = scmp.eq.s32.totalorder %s18, 1
      %p141 = scmp.ne.s32.totalorder %s136, %s138
      %p142 = scmp.eq.s32.totalorder %s18, 0
      %p143 = por %p141, %p142
      %p144 = scmp.ne.s32.totalorder %s136, %s138
      %p145 = scmp.eq.s32.totalorder %s23, 1
      %p146 = por %p144, %p145
      %p147 = scmp.ne.s32.totalorder %s138, %s139
      %p148 = scmp.eq.s32.totalorder %s23, 0
      %p149 = por %p147, %p148
      %p150 = scmp.ne.s32.totalorder %s138, %s139
      %p151 = scmp.eq.s32.totalorder %s24, 1
      %p152 = por %p150, %p151
      %p154 = scmp.ne.s32.totalorder %s139, %s153
      %p155 = scmp.eq.s32.totalorder %s24, 0
      %p156 = por %p154, %p155
      %s158 = sadd.s32 %s157, 1
      %p161 = scmp.eq.s32.totalorder %s18, 1
      %p162 = scmp.ne.s32.totalorder %s157, %s159
      %p163 = scmp.eq.s32.totalorder %s18, 0
      %p164 = por %p162, %p163
      %p165 = scmp.ne.s32.totalorder %s157, %s159
      %p166 = scmp.eq.s32.totalorder %s23, 1
      %p167 = por %p165, %p166
      %p168 = scmp.ne.s32.totalorder %s159, %s160
      %p169 = scmp.eq.s32.totalorder %s23, 0
      %p170 = por %p168, %p169
      %p171 = scmp.ne.s32.totalorder %s159, %s160
      %p172 = scmp.eq.s32.totalorder %s24, 1
      %p173 = por %p171, %p172
      %p175 = scmp.ne.s32.totalorder %s160, %s174
      %p176 = scmp.eq.s32.totalorder %s24, 0
      %p177 = por %p175, %p176
      %s179 = sadd.s32 %s178, 1
      %p182 = scmp.eq.s32.totalorder %s18, 1
      %p183 = scmp.ne.s32.totalorder %s178, %s180
      %p184 = scmp.eq.s32.totalorder %s18, 0
      %p185 = por %p183, %p184
      %p186 = scmp.ne.s32.totalorder %s178, %s180
      %p187 = scmp.eq.s32.totalorder %s23, 1
      %p188 = por %p186, %p187
      %p189 = scmp.ne.s32.totalorder %s180, %s181
      %p190 = scmp.eq.s32.totalorder %s23, 0
      %p191 = por %p189, %p190
      %p192 = scmp.ne.s32.totalorder %s180, %s181
      %p193 = scmp.eq.s32.totalorder %s24, 1
      %p194 = por %p192, %p193
      %p196 = scmp.ne.s32.totalorder %s181, %s195
      %p197 = scmp.eq.s32.totalorder %s24, 0
      %p198 = por %p196, %p197
      %s200 = sadd.s32 %s199, 1
      %p203 = scmp.eq.s32.totalorder %s18, 1
      %p204 = scmp.ne.s32.totalorder %s199, %s201
      %p205 = scmp.eq.s32.totalorder %s18, 0
      %p206 = por %p204, %p205
      %p207 = scmp.ne.s32.totalorder %s199, %s201
      %p208 = scmp.eq.s32.totalorder %s23, 1
      %p209 = por %p207, %p208
      %p210 = scmp.ne.s32.totalorder %s201, %s202
      %p211 = scmp.eq.s32.totalorder %s23, 0
      %p212 = por %p210, %p211
      %p213 = scmp.ne.s32.totalorder %s201, %s202
      %p214 = scmp.eq.s32.totalorder %s24, 1
      %p215 = por %p213, %p214
      %p217 = scmp.ne.s32.totalorder %s202, %s216
      %p218 = scmp.eq.s32.totalorder %s24, 0
      %p219 = por %p217, %p218
      %s220 = ssub.s32 %s18, %s25
      %p221 = scmp.eq.s32.totalorder %s220, 0
      %s223 = sadd.s32 %s222, 1
      %s224 = scalar_select %p221, %s222, %s223
      %p227 = pneg %p221
      %p228 = scmp.eq.s32.totalorder %s18, 1
      %p229 = por %p227, %p228
      %p230 = scmp.ne.s32.totalorder %s222, %s225
      %p231 = scmp.eq.s32.totalorder %s18, 0
      %p232 = por %p230, %p231
      %p233 = scmp.ne.s32.totalorder %s222, %s225
      %p234 = scmp.eq.s32.totalorder %s23, 1
      %p235 = por %p233, %p234
      %p236 = scmp.ne.s32.totalorder %s225, %s226
      %p237 = scmp.eq.s32.totalorder %s23, 0
      %p238 = por %p236, %p237
      %p239 = scmp.ne.s32.totalorder %s225, %s226
      %p240 = scmp.eq.s32.totalorder %s24, 1
      %p241 = por %p239, %p240
      %p243 = scmp.ne.s32.totalorder %s226, %s242
      %p244 = scmp.eq.s32.totalorder %s24, 0
      %p245 = por %p243, %p244
      %p246 = scmp.le.s32.totalorder 1, %s18
      %p247 = scmp.lt.s32.totalorder %s18, 3
      %p248 = pnand %p246, %p247
      %p249 = pneg %p248
      // Predicated region
      $region9: #{tpu_custom_call.1} parent=5 // pred_check
        _
      $region10: #{tpu_custom_call.1} parent=5 // pred_check_branch
        %251 = sbr.rel (%p248) target = $region12
      $region11: #{tpu_custom_call.1} parent=5 // pred_region
        %s252 = ssub.s32 %s18, 1
        // Predicated region
        $region13: #{tpu_custom_call.1} parent=11 // pred_check
          %p253 = pneg %p65
        $region14: #{tpu_custom_call.1} parent=11 // pred_check_branch
          %255 = sbr.rel (%p253) target = $region16
        $region15: #{tpu_custom_call.1} parent=11 // pred_region
          _
        $region16: #{tpu_custom_call.1} parent=11 // pred_fallthru
          _
        // Predicated region
        $region17: #{tpu_custom_call.1} parent=11 // pred_check
          %p256 = pneg %p86
        $region18: #{tpu_custom_call.1} parent=11 // pred_check_branch
          %258 = sbr.rel (%p256) target = $region20
        $region19: #{tpu_custom_call.1} parent=11 // pred_region
          _
        $region20: #{tpu_custom_call.1} parent=11 // pred_fallthru
          _
        // Predicated region
        $region21: #{tpu_custom_call.1} parent=11 // pred_check
          %p259 = pneg %p107
        $region22: #{tpu_custom_call.1} parent=11 // pred_check_branch
          %261 = sbr.rel (%p259) target = $region24
        $region23: #{tpu_custom_call.1} parent=11 // pred_region
          _
        $region24: #{tpu_custom_call.1} parent=11 // pred_fallthru
          _
        // Predicated region
        $region25: #{tpu_custom_call.1} parent=11 // pred_check
          %p262 = pneg %p128
        $region26: #{tpu_custom_call.1} parent=11 // pred_check_branch
          %264 = sbr.rel (%p262) target = $region28
        $region27: #{tpu_custom_call.1} parent=11 // pred_region
          _
        $region28: #{tpu_custom_call.1} parent=11 // pred_fallthru
          _
        // Predicated region
        $region29: #{tpu_custom_call.1} parent=11 // pred_check
          %p265 = pneg %p149
        $region30: #{tpu_custom_call.1} parent=11 // pred_check_branch
          %267 = sbr.rel (%p265) target = $region32
        $region31: #{tpu_custom_call.1} parent=11 // pred_region
          _
        $region32: #{tpu_custom_call.1} parent=11 // pred_fallthru
          _
        // Predicated region
        $region33: #{tpu_custom_call.1} parent=11 // pred_check
          %p268 = pneg %p170
        $region34: #{tpu_custom_call.1} parent=11 // pred_check_branch
          %270 = sbr.rel (%p268) target = $region36
        $region35: #{tpu_custom_call.1} parent=11 // pred_region
          _
        $region36: #{tpu_custom_call.1} parent=11 // pred_fallthru
          _
        // Predicated region
        $region37: #{tpu_custom_call.1} parent=11 // pred_check
          %p271 = pneg %p191
        $region38: #{tpu_custom_call.1} parent=11 // pred_check_branch
          %273 = sbr.rel (%p271) target = $region40
        $region39: #{tpu_custom_call.1} parent=11 // pred_region
          _
        $region40: #{tpu_custom_call.1} parent=11 // pred_fallthru
          _
        // Predicated region
        $region41: #{tpu_custom_call.1} parent=11 // pred_check
          %p274 = pneg %p212
        $region42: #{tpu_custom_call.1} parent=11 // pred_check_branch
          %276 = sbr.rel (%p274) target = $region44
        $region43: #{tpu_custom_call.1} parent=11 // pred_region
          _
        $region44: #{tpu_custom_call.1} parent=11 // pred_fallthru
          _
      $region12: #{tpu_custom_call.1} parent=5 // pred_fallthru
        _
      %p277 = scmp.lt.s32.totalorder %s18, 2
      // Predicated region
      $region45: #{tpu_custom_call.1} parent=5 // pred_check
        %p278 = pneg %p277
      $region46: #{tpu_custom_call.1} parent=5 // pred_check_branch
        %280 = sbr.rel (%p278) target = $region48
      $region47: #{tpu_custom_call.1} parent=5 // pred_region
        // Predicated region
        $region49: #{tpu_custom_call.1} parent=47 // pred_check
          %p281 = pneg %p38
        $region50: #{tpu_custom_call.1} parent=47 // pred_check_branch
          %283 = sbr.rel (%p281) target = $region52
        $region51: #{tpu_custom_call.1} parent=47 // pred_region
          %s284 = smul.u32 16, %s18
          %p285 = scmp.lt.s32.totalorder %s284, 31
          %s286 = scalar_select %p285, %s284, 31
          %s287 = smul.addr %s286, 8
          %s288 = scalar_lea.vmem %s0, %s287
          %s289 = smul.u32 16, %s18
        $region52: #{tpu_custom_call.1} parent=47 // pred_fallthru
          _
      $region48: #{tpu_custom_call.1} parent=5 // pred_fallthru
        _
      %p290 = scmp.le.s32.totalorder 1, %s18
      %p291 = scmp.lt.s32.totalorder %s18, 3
      %p292 = pnand %p290, %p291
      %p293 = pneg %p292
      // Predicated region
      $region53: #{tpu_custom_call.1} parent=5 // pred_check
        _
      $region54: #{tpu_custom_call.1} parent=5 // pred_check_branch
        %295 = sbr.rel (%p292) target = $region56
      $region55: #{tpu_custom_call.1} parent=5 // pred_region
        %s296 = ssub.s32 %s18, 1
        %s297 = smul.u32 16, %s23
        %p298 = scmp.lt.s32.totalorder %s297, 31
        %s299 = scalar_select %p298, %s297, 31
        %s300 = smul.addr %s299, 8
        %s301 = scalar_lea.vmem %s0, %s300
        %p302 = pneg %p44
        %p303 = pneg %p41
        %p304 = pneg %p65
        %p305 = pneg %p62
        %p306 = pneg %p86
        %p307 = pneg %p83
        %p308 = pneg %p107
        %p309 = pneg %p104
        %p310 = pneg %p128
        %p311 = pneg %p125
        %p312 = pneg %p149
        %p313 = pneg %p146
        %p314 = pneg %p170
        %p315 = pneg %p167
        %p316 = pneg %p191
        %p317 = pneg %p188
        %p318 = pneg %p212
        %p319 = pneg %p209
        %p320 = pneg %p238
        %p321 = pneg %p235
        %s322 = sand.u32 %s225, 1
        %s323 = scalar_lea.sflag [#allocation3], %s322
        %s324 = sand.u32 %s225, 1
        %s325 = smul.addr %s324, 8
        %s326 = scalar_lea.vmem [#allocation2], %s325
        %s327 = smul.u32 16, %s23
        %p328 = scmp.lt.s32.totalorder %s327, 31
        %s329 = scalar_select %p328, %s327, 31
        %s330 = smul.addr %s329, 8
        %s331 = scalar_lea.vmem %s0, %s330
        %s332 = smul.u32 16, %s23
        %v333 = vld [vmem:[%s331] sm:$0xff]
        %v334 = vld [vmem:[%s331 + $0x8] sm:$0xff]
        %v335 = vld [vmem:[%s331 + $0x10] sm:$0xff]
        %v336 = vld [vmem:[%s331 + $0x18] sm:$0xff]
        %v337 = vld [vmem:[%s331 + $0x20] sm:$0xff]
        %v338 = vld [vmem:[%s331 + $0x28] sm:$0xff]
        %v339 = vld [vmem:[%s331 + $0x30] sm:$0xff]
        %v340 = vld [vmem:[%s331 + $0x38] sm:$0xff]
        %v341 = vld [vmem:[%s331 + $0x40] sm:$0xff]
        %v342 = vld [vmem:[%s331 + $0x48] sm:$0xff]
        %v343 = vld [vmem:[%s331 + $0x50] sm:$0xff]
        %v344 = vld [vmem:[%s331 + $0x58] sm:$0xff]
        %v345 = vld [vmem:[%s331 + $0x60] sm:$0xff]
        %v346 = vld [vmem:[%s331 + $0x68] sm:$0xff]
        %v347 = vld [vmem:[%s331 + $0x70] sm:$0xff]
        %v348 = vld [vmem:[%s331 + $0x78] sm:$0xff]
        %v349 = vld [vmem:[%s1] sm:$0xff]
        %v350 = vld [vmem:[%s1 + $0x8] sm:$0xff]
        %v351 = vld [vmem:[%s1 + $0x10] sm:$0xff]
        %v352 = vld [vmem:[%s1 + $0x18] sm:$0xff]
        %v353 = vld [vmem:[%s2] sm:$0xff]
        %v354 = vld [vmem:[%s2 + $0x8] sm:$0xff]
        %v355 = vld [vmem:[%s2 + $0x10] sm:$0xff]
        %v356 = vld [vmem:[%s2 + $0x18] sm:$0xff]
        %358 = vset.pattern.permute.xlu0 0
        %359 = vperm.xlu0 %358, %v353
        %v360 = vpop.permute.xlu0 %359
        %363 = vset.pattern.permute.xlu0 0
        %364 = vperm.xlu0 %363, %v354
        %v365 = vpop.permute.xlu0 %364
        %368 = vset.pattern.permute.xlu0 0
        %369 = vperm.xlu0 %368, %v355
        %v370 = vpop.permute.xlu0 %369
        %373 = vset.pattern.permute.xlu0 0
        %374 = vperm.xlu0 %373, %v356
        %v375 = vpop.permute.xlu0 %374
        %vm377 = vcmask 130048
        %v379 = vsel %vm377, %v349, 0
        %v382 = vsel %vm377, %v350, 0
        %v385 = vsel %vm377, %v351, 0
        %v388 = vsel %vm377, %v352, 0
        %v391 = vsel %vm377, %v333, 0
        %v394 = vsel %vm377, %v334, 0
        %v397 = vsel %vm377, %v335, 0
        %v400 = vsel %vm377, %v336, 0
        %v403 = vsel %vm377, %v337, 0
        %v406 = vsel %vm377, %v338, 0
        %v409 = vsel %vm377, %v339, 0
        %v412 = vsel %vm377, %v340, 0
        %v415 = vsel %vm377, %v341, 0
        %v418 = vsel %vm377, %v342, 0
        %v421 = vsel %vm377, %v343, 0
        %v424 = vsel %vm377, %v344, 0
        %v427 = vsel %vm377, %v345, 0
        %v430 = vsel %vm377, %v346, 0
        %v433 = vsel %vm377, %v347, 0
        %v436 = vsel %vm377, %v348, 0
        %438 = vmatprep.subr.mxu0 0.0
        %439 = vmatpush1.xpose.msra.mxu0 %v391
        %440 = vmatprep.subr.mxu0 0.0
        %441 = vmatpush1.xpose.msra.mxu0 %v394
        %442 = vmatprep.subr.mxu0 0.0
        %443 = vmatpush1.xpose.msra.mxu0 %v397
        %444 = vmatprep.subr.mxu0 0.0
        %445 = vmatpush1.xpose.msra.mxu0 %v400
        %446 = vmatprep.subr.mxu0 0.0
        %447 = vmatpush1.xpose.msra.mxu0 %v403
        %448 = vmatprep.subr.mxu0 0.0
        %449 = vmatpush1.xpose.msra.mxu0 %v406
        %450 = vmatprep.subr.mxu0 0.0
        %451 = vmatpush1.xpose.msra.mxu0 %v409
        %452 = vmatprep.subr.mxu0 0.0
        %453 = vmatpush1.xpose.msra.mxu0 %v412
        %454 = vmatprep.subr.mxu0 0.0
        %455 = vmatpush1.xpose.msra.mxu0 %v415
        %456 = vmatprep.subr.mxu0 0.0
        %457 = vmatpush1.xpose.msra.mxu0 %v418
        %458 = vmatprep.subr.mxu0 0.0
        %459 = vmatpush1.xpose.msra.mxu0 %v421
        %460 = vmatprep.subr.mxu0 0.0
        %461 = vmatpush1.xpose.msra.mxu0 %v424
        %462 = vmatprep.subr.mxu0 0.0
        %463 = vmatpush1.xpose.msra.mxu0 %v427
        %464 = vmatprep.subr.mxu0 0.0
        %465 = vmatpush1.xpose.msra.mxu0 %v430
        %466 = vmatprep.subr.mxu0 0.0
        %467 = vmatpush1.xpose.msra.mxu0 %v433
        %468 = vmatprep.subr.mxu0 0.0
        %469 = vmatpush1.xpose.msra.mxu0 %v436
        %470 = vmatprep.subr.mxu0 0.0
        %471 = vmatpush1.xpose.msra.mxu0 0.0
        %472 = vmatprep.subr.mxu0 0.0
        %473 = vmatpush1.xpose.msra.mxu0 0.0
        %474 = vmatprep.subr.mxu0 0.0
        %475 = vmatpush1.xpose.msra.mxu0 0.0
        %476 = vmatprep.subr.mxu0 0.0
        %477 = vmatpush1.xpose.msra.mxu0 0.0
        %478 = vmatprep.subr.mxu0 0.0
        %479 = vmatpush1.xpose.msra.mxu0 0.0
        %480 = vmatprep.subr.mxu0 0.0
        %481 = vmatpush1.xpose.msra.mxu0 0.0
        %482 = vmatprep.subr.mxu0 0.0
        %483 = vmatpush1.xpose.msra.mxu0 0.0
        %484 = vmatprep.subr.mxu0 0.0
        %485 = vmatpush1.xpose.msra.mxu0 0.0
        %486 = vmatprep.subr.mxu0 0.0
        %487 = vmatpush1.xpose.msra.mxu0 0.0
        %488 = vmatprep.subr.mxu0 0.0
        %489 = vmatpush1.xpose.msra.mxu0 0.0
        %490 = vmatprep.subr.mxu0 0.0
        %491 = vmatpush1.xpose.msra.mxu0 0.0
        %492 = vmatprep.subr.mxu0 0.0
        %493 = vmatpush1.xpose.msra.mxu0 0.0
        %494 = vmatprep.subr.mxu0 0.0
        %495 = vmatpush1.xpose.msra.mxu0 0.0
        %496 = vmatprep.subr.mxu0 0.0
        %497 = vmatpush1.xpose.msra.mxu0 0.0
        %498 = vmatprep.subr.mxu0 0.0
        %499 = vmatpush1.xpose.msra.mxu0 0.0
        %500 = vmatprep.subr.mxu0 0.0
        %501 = vmatpush1.xpose.msra.mxu0 0.0
        %502 = vmatprep.mubr.f32.mxu0 0.0
        %503 = vmatmul.mubr.f32.gmra.mrb[0].mxu0 %v379
        %v504 = vpop.f32.mrb[0].mxu0
        %v505 = vadd.f32 %v360, %v504
        %v506 = vpop.f32.mrb[0].mxu0
        %507 = vmatprep.mubr.f32.mxu0 0.0
        %508 = vmatmul.mubr.f32.gmra.mrb[0].mxu0 %v382
        %v509 = vpop.f32.mrb[0].mxu0
        %v510 = vadd.f32 %v365, %v509
        %v511 = vpop.f32.mrb[0].mxu0
        %512 = vmatprep.mubr.f32.mxu0 0.0
        %513 = vmatmul.mubr.f32.gmra.mrb[0].mxu0 %v385
        %v514 = vpop.f32.mrb[0].mxu0
        %v515 = vadd.f32 %v370, %v514
        %v516 = vpop.f32.mrb[0].mxu0
        %517 = vmatprep.mubr.f32.mxu0 0.0
        %518 = vmatmul.mubr.f32.gmra.mrb[0].mxu0 %v388
        %v519 = vpop.f32.mrb[0].mxu0
        %v520 = vadd.f32 %v375, %v519
        %v521 = vpop.f32.mrb[0].mxu0
        %522 = vdwg.mxu0
        %vm523 = vcmp.gt.f32.partialorder %v505, 0.0
        %vm524 = vcmp.gt.f32.partialorder %v510, 0.0
        %vm525 = vcmp.gt.f32.partialorder %v515, 0.0
        %vm526 = vcmp.gt.f32.partialorder %v520, 0.0
        %v527 = vmul.f32 %v505, 1.442695
        %v528 = vpow.pop %v527
        %v529 = vmul.f32 %v510, 1.442695
        %v530 = vpow.pop %v529
        %v531 = vmul.f32 %v515, 1.442695
        %v532 = vpow.pop %v531
        %v533 = vmul.f32 %v520, 1.442695
        %v534 = vpow.pop %v533
        %v535 = vsub.f32 %v528, 1.0
        %v536 = vsub.f32 %v530, 1.0
        %v537 = vsub.f32 %v532, 1.0
        %v538 = vsub.f32 %v534, 1.0
        %v539 = vmul.f32 %v535, 1.6732632
        %v540 = vmul.f32 %v536, 1.6732632
        %v541 = vmul.f32 %v537, 1.6732632
        %v542 = vmul.f32 %v538, 1.6732632
        %v543 = vsel %vm523, %v505, %v539
        %v544 = vsel %vm524, %v510, %v540
        %v545 = vsel %vm525, %v515, %v541
        %v546 = vsel %vm526, %v520, %v542
        %v547 = vmul.f32 %v543, 1.050701
        %v548 = vmul.f32 %v544, 1.050701
        %v549 = vmul.f32 %v545, 1.050701
        %v550 = vmul.f32 %v546, 1.050701
        %v551 = vld [vmem:[%s3] sm:$0xff]
        %v552 = vld [vmem:[%s3 + $0x8] sm:$0xff]
        %v553 = vld [vmem:[%s3 + $0x10] sm:$0xff]
        %v554 = vld [vmem:[%s3 + $0x18] sm:$0xff]
        %v555 = vld [vmem:[%s4] sm:$0xff]
        %v556 = vld [vmem:[%s4 + $0x8] sm:$0xff]
        %v557 = vld [vmem:[%s4 + $0x10] sm:$0xff]
        %v558 = vld [vmem:[%s4 + $0x18] sm:$0xff]
        %560 = vset.pattern.permute.xlu0 0
        %561 = vperm.xlu0 %560, %v555
        %v562 = vpop.permute.xlu0 %561
        %565 = vset.pattern.permute.xlu0 0
        %566 = vperm.xlu0 %565, %v556
        %v567 = vpop.permute.xlu0 %566
        %570 = vset.pattern.permute.xlu0 0
        %571 = vperm.xlu0 %570, %v557
        %v572 = vpop.permute.xlu0 %571
        %575 = vset.pattern.permute.xlu0 0
        %576 = vperm.xlu0 %575, %v558
        %v577 = vpop.permute.xlu0 %576
        %vm579 = vcmask 261120
        %v581 = vsel %vm579, %v551, 0
        %v584 = vsel %vm579, %v552, 0
        %v587 = vsel %vm579, %v553, 0
        %v590 = vsel %vm579, %v554, 0
        %592 = vmatprep.subr.mxu0 0.0
        %593 = vmatpush1.msra.mxu0 %v547
        %594 = vmatprep.subr.mxu0 0.0
        %595 = vmatpush1.msra.mxu0 %v548
        %596 = vmatprep.subr.mxu0 0.0
        %597 = vmatpush1.msra.mxu0 %v549
        %598 = vmatprep.subr.mxu0 0.0
        %599 = vmatpush1.msra.mxu0 %v550
        %600 = vmatprep.subr.mxu0 0.0
        %601 = vmatpush1.msra.mxu0 0.0
        %602 = vmatprep.subr.mxu0 0.0
        %603 = vmatpush1.msra.mxu0 0.0
        %604 = vmatprep.subr.mxu0 0.0
        %605 = vmatpush1.msra.mxu0 0.0
        %606 = vmatprep.subr.mxu0 0.0
        %607 = vmatpush1.msra.mxu0 0.0
        %608 = vmatprep.subr.mxu0 0.0
        %609 = vmatpush1.msra.mxu0 0.0
        %610 = vmatprep.subr.mxu0 0.0
        %611 = vmatpush1.msra.mxu0 0.0
        %612 = vmatprep.subr.mxu0 0.0
        %613 = vmatpush1.msra.mxu0 0.0
        %614 = vmatprep.subr.mxu0 0.0
        %615 = vmatpush1.msra.mxu0 0.0
        %616 = vmatprep.subr.mxu0 0.0
        %617 = vmatpush1.msra.mxu0 0.0
        %618 = vmatprep.subr.mxu0 0.0
        %619 = vmatpush1.msra.mxu0 0.0
        %620 = vmatprep.subr.mxu0 0.0
        %621 = vmatpush1.msra.mxu0 0.0
        %622 = vmatprep.subr.mxu0 0.0
        %623 = vmatpush1.msra.mxu0 0.0
        %624 = vmatprep.subr.mxu0 0.0
        %625 = vmatpush1.msra.mxu0 0.0
        %626 = vmatprep.subr.mxu0 0.0
        %627 = vmatpush1.msra.mxu0 0.0
        %628 = vmatprep.subr.mxu0 0.0
        %629 = vmatpush1.msra.mxu0 0.0
        %630 = vmatprep.subr.mxu0 0.0
        %631 = vmatpush1.msra.mxu0 0.0
        %632 = vmatprep.subr.mxu0 0.0
        %633 = vmatpush1.msra.mxu0 0.0
        %634 = vmatprep.subr.mxu0 0.0
        %635 = vmatpush1.msra.mxu0 0.0
        %636 = vmatprep.subr.mxu0 0.0
        %637 = vmatpush1.msra.mxu0 0.0
        %638 = vmatprep.subr.mxu0 0.0
        %639 = vmatpush1.msra.mxu0 0.0
        %640 = vmatprep.subr.mxu0 0.0
        %641 = vmatpush1.msra.mxu0 0.0
        %642 = vmatprep.subr.mxu0 0.0
        %643 = vmatpush1.msra.mxu0 0.0
        %644 = vmatprep.subr.mxu0 0.0
        %645 = vmatpush1.msra.mxu0 0.0
        %646 = vmatprep.subr.mxu0 0.0
        %647 = vmatpush1.msra.mxu0 0.0
        %648 = vmatprep.subr.mxu0 0.0
        %649 = vmatpush1.msra.mxu0 0.0
        %650 = vmatprep.subr.mxu0 0.0
        %651 = vmatpush1.msra.mxu0 0.0
        %652 = vmatprep.subr.mxu0 0.0
        %653 = vmatpush1.msra.mxu0 0.0
        %654 = vmatprep.subr.mxu0 0.0
        %655 = vmatpush1.msra.mxu0 0.0
        %656 = vmatprep.mubr.f32.mxu0 0.0
        %657 = vmatmul.mubr.f32.gmra.mrb[0].mxu0 %v581
        %v658 = vpop.f32.mrb[0].mxu0
        %v659 = vadd.f32 %v562, %v658
        %v660 = vpop.f32.mrb[0].mxu0
        %661 = vmatprep.mubr.f32.mxu0 0.0
        %662 = vmatmul.mubr.f32.gmra.mrb[0].mxu0 %v584
        %v663 = vpop.f32.mrb[0].mxu0
        %v664 = vadd.f32 %v567, %v663
        %v665 = vpop.f32.mrb[0].mxu0
        %666 = vmatprep.mubr.f32.mxu0 0.0
        %667 = vmatmul.mubr.f32.gmra.mrb[0].mxu0 %v587
        %v668 = vpop.f32.mrb[0].mxu0
        %v669 = vadd.f32 %v572, %v668
        %v670 = vpop.f32.mrb[0].mxu0
        %671 = vmatprep.mubr.f32.mxu0 0.0
        %672 = vmatmul.mubr.f32.gmra.mrb[0].mxu0 %v590
        %v673 = vpop.f32.mrb[0].mxu0
        %v674 = vadd.f32 %v577, %v673
        %v675 = vpop.f32.mrb[0].mxu0
        %676 = vdwg.mxu0
        %vm677 = vcmp.gt.f32.partialorder %v659, 0.0
        %vm678 = vcmp.gt.f32.partialorder %v664, 0.0
        %vm679 = vcmp.gt.f32.partialorder %v669, 0.0
        %vm680 = vcmp.gt.f32.partialorder %v674, 0.0
        %v681 = vmul.f32 %v659, 1.442695
        %v682 = vpow.pop %v681
        %v683 = vmul.f32 %v664, 1.442695
        %v684 = vpow.pop %v683
        %v685 = vmul.f32 %v669, 1.442695
        %v686 = vpow.pop %v685
        %v687 = vmul.f32 %v674, 1.442695
        %v688 = vpow.pop %v687
        %v689 = vsub.f32 %v682, 1.0
        %v690 = vsub.f32 %v684, 1.0
        %v691 = vsub.f32 %v686, 1.0
        %v692 = vsub.f32 %v688, 1.0
        %v693 = vmul.f32 %v689, 1.6732632
        %v694 = vmul.f32 %v690, 1.6732632
        %v695 = vmul.f32 %v691, 1.6732632
        %v696 = vmul.f32 %v692, 1.6732632
        %v697 = vsel %vm677, %v659, %v693
        %v698 = vsel %vm678, %v664, %v694
        %v699 = vsel %vm679, %v669, %v695
        %v700 = vsel %vm680, %v674, %v696
        %v701 = vmul.f32 %v697, 1.050701
        %v702 = vmul.f32 %v698, 1.050701
        %v703 = vmul.f32 %v699, 1.050701
        %v704 = vmul.f32 %v700, 1.050701
        %v705 = vld [vmem:[%s5] sm:$0xff]
        %v706 = vld [vmem:[%s5 + $0x8] sm:$0xff]
        %v707 = vld [vmem:[%s5 + $0x10] sm:$0xff]
        %v708 = vld [vmem:[%s5 + $0x18] sm:$0xff]
        %v709 = vld [vmem:[%s6] sm:$0xff]
        %v710 = vld [vmem:[%s6 + $0x8] sm:$0xff]
        %v711 = vld [vmem:[%s6 + $0x10] sm:$0xff]
        %v712 = vld [vmem:[%s6 + $0x18] sm:$0xff]
        %714 = vset.pattern.permute.xlu0 0
        %715 = vperm.xlu0 %714, %v709
        %v716 = vpop.permute.xlu0 %715
        %719 = vset.pattern.permute.xlu0 0
        %720 = vperm.xlu0 %719, %v710
        %v721 = vpop.permute.xlu0 %720
        %724 = vset.pattern.permute.xlu0 0
        %725 = vperm.xlu0 %724, %v711
        %v726 = vpop.permute.xlu0 %725
        %729 = vset.pattern.permute.xlu0 0
        %730 = vperm.xlu0 %729, %v712
        %v731 = vpop.permute.xlu0 %730
        %v734 = vsel %vm579, %v705, 0
        %v737 = vsel %vm579, %v706, 0
        %v740 = vsel %vm579, %v707, 0
        %v743 = vsel %vm579, %v708, 0
        %745 = vmatprep.subr.mxu0 0.0
        %746 = vmatpush1.msra.mxu0 %v701
        %747 = vmatprep.subr.mxu0 0.0
        %748 = vmatpush1.msra.mxu0 %v702
        %749 = vmatprep.subr.mxu0 0.0
        %750 = vmatpush1.msra.mxu0 %v703
        %751 = vmatprep.subr.mxu0 0.0
        %752 = vmatpush1.msra.mxu0 %v704
        %753 = vmatprep.subr.mxu0 0.0
        %754 = vmatpush1.msra.mxu0 0.0
        %755 = vmatprep.subr.mxu0 0.0
        %756 = vmatpush1.msra.mxu0 0.0
        %757 = vmatprep.subr.mxu0 0.0
        %758 = vmatpush1.msra.mxu0 0.0
        %759 = vmatprep.subr.mxu0 0.0
        %760 = vmatpush1.msra.mxu0 0.0
        %761 = vmatprep.subr.mxu0 0.0
        %762 = vmatpush1.msra.mxu0 0.0
        %763 = vmatprep.subr.mxu0 0.0
        %764 = vmatpush1.msra.mxu0 0.0
        %765 = vmatprep.subr.mxu0 0.0
        %766 = vmatpush1.msra.mxu0 0.0
        %767 = vmatprep.subr.mxu0 0.0
        %768 = vmatpush1.msra.mxu0 0.0
        %769 = vmatprep.subr.mxu0 0.0
        %770 = vmatpush1.msra.mxu0 0.0
        %771 = vmatprep.subr.mxu0 0.0
        %772 = vmatpush1.msra.mxu0 0.0
        %773 = vmatprep.subr.mxu0 0.0
        %774 = vmatpush1.msra.mxu0 0.0
        %775 = vmatprep.subr.mxu0 0.0
        %776 = vmatpush1.msra.mxu0 0.0
        %777 = vmatprep.subr.mxu0 0.0
        %778 = vmatpush1.msra.mxu0 0.0
        %779 = vmatprep.subr.mxu0 0.0
        %780 = vmatpush1.msra.mxu0 0.0
        %781 = vmatprep.subr.mxu0 0.0
        %782 = vmatpush1.msra.mxu0 0.0
        %783 = vmatprep.subr.mxu0 0.0
        %784 = vmatpush1.msra.mxu0 0.0
        %785 = vmatprep.subr.mxu0 0.0
        %786 = vmatpush1.msra.mxu0 0.0
        %787 = vmatprep.subr.mxu0 0.0
        %788 = vmatpush1.msra.mxu0 0.0
        %789 = vmatprep.subr.mxu0 0.0
        %790 = vmatpush1.msra.mxu0 0.0
        %791 = vmatprep.subr.mxu0 0.0
        %792 = vmatpush1.msra.mxu0 0.0
        %793 = vmatprep.subr.mxu0 0.0
        %794 = vmatpush1.msra.mxu0 0.0
        %795 = vmatprep.subr.mxu0 0.0
        %796 = vmatpush1.msra.mxu0 0.0
        %797 = vmatprep.subr.mxu0 0.0
        %798 = vmatpush1.msra.mxu0 0.0
        %799 = vmatprep.subr.mxu0 0.0
        %800 = vmatpush1.msra.mxu0 0.0
        %801 = vmatprep.subr.mxu0 0.0
        %802 = vmatpush1.msra.mxu0 0.0
        %803 = vmatprep.subr.mxu0 0.0
        %804 = vmatpush1.msra.mxu0 0.0
        %805 = vmatprep.subr.mxu0 0.0
        %806 = vmatpush1.msra.mxu0 0.0
        %807 = vmatprep.subr.mxu0 0.0
        %808 = vmatpush1.msra.mxu0 0.0
        %809 = vmatprep.mubr.f32.mxu0 0.0
        %810 = vmatmul.mubr.f32.gmra.mrb[0].mxu0 %v734
        %v811 = vpop.f32.mrb[0].mxu0
        %v812 = vadd.f32 %v716, %v811
        %v813 = vpop.f32.mrb[0].mxu0
        %814 = vmatprep.mubr.f32.mxu0 0.0
        %815 = vmatmul.mubr.f32.gmra.mrb[0].mxu0 %v737
        %v816 = vpop.f32.mrb[0].mxu0
        %v817 = vadd.f32 %v721, %v816
        %v818 = vpop.f32.mrb[0].mxu0
        %819 = vmatprep.mubr.f32.mxu0 0.0
        %820 = vmatmul.mubr.f32.gmra.mrb[0].mxu0 %v740
        %v821 = vpop.f32.mrb[0].mxu0
        %v822 = vadd.f32 %v726, %v821
        %v823 = vpop.f32.mrb[0].mxu0
        %824 = vmatprep.mubr.f32.mxu0 0.0
        %825 = vmatmul.mubr.f32.gmra.mrb[0].mxu0 %v743
        %v826 = vpop.f32.mrb[0].mxu0
        %v827 = vadd.f32 %v731, %v826
        %v828 = vpop.f32.mrb[0].mxu0
        %829 = vdwg.mxu0
        %vm830 = vcmp.gt.f32.partialorder %v812, 0.0
        %vm831 = vcmp.gt.f32.partialorder %v817, 0.0
        %vm832 = vcmp.gt.f32.partialorder %v822, 0.0
        %vm833 = vcmp.gt.f32.partialorder %v827, 0.0
        %v834 = vmul.f32 %v812, 1.442695
        %v835 = vpow.pop %v834
        %v836 = vmul.f32 %v817, 1.442695
        %v837 = vpow.pop %v836
        %v838 = vmul.f32 %v822, 1.442695
        %v839 = vpow.pop %v838
        %v840 = vmul.f32 %v827, 1.442695
        %v841 = vpow.pop %v840
        %v842 = vsub.f32 %v835, 1.0
        %v843 = vsub.f32 %v837, 1.0
        %v844 = vsub.f32 %v839, 1.0
        %v845 = vsub.f32 %v841, 1.0
        %v846 = vmul.f32 %v842, 1.6732632
        %v847 = vmul.f32 %v843, 1.6732632
        %v848 = vmul.f32 %v844, 1.6732632
        %v849 = vmul.f32 %v845, 1.6732632
        %v850 = vsel %vm830, %v812, %v846
        %v851 = vsel %vm831, %v817, %v847
        %v852 = vsel %vm832, %v822, %v848
        %v853 = vsel %vm833, %v827, %v849
        %v854 = vmul.f32 %v850, 1.050701
        %v855 = vmul.f32 %v851, 1.050701
        %v856 = vmul.f32 %v852, 1.050701
        %v857 = vmul.f32 %v853, 1.050701
        %v858 = vld [vmem:[%s7] sm:$0xff]
        %v859 = vld [vmem:[%s8] sm:$0xff]
        %861 = vset.pattern.permute.xlu0 0
        %862 = vperm.xlu0 %861, %v859
        %v863 = vpop.permute.xlu0 %862
        %v866 = vsel %vm579, %v858, 0
        %868 = vmatprep.subr.mxu0 0.0
        %869 = vmatpush1.msra.mxu0 %v854
        %870 = vmatprep.subr.mxu0 0.0
        %871 = vmatpush1.msra.mxu0 %v855
        %872 = vmatprep.subr.mxu0 0.0
        %873 = vmatpush1.msra.mxu0 %v856
        %874 = vmatprep.subr.mxu0 0.0
        %875 = vmatpush1.msra.mxu0 %v857
        %876 = vmatprep.subr.mxu0 0.0
        %877 = vmatpush1.msra.mxu0 0.0
        %878 = vmatprep.subr.mxu0 0.0
        %879 = vmatpush1.msra.mxu0 0.0
        %880 = vmatprep.subr.mxu0 0.0
        %881 = vmatpush1.msra.mxu0 0.0
        %882 = vmatprep.subr.mxu0 0.0
        %883 = vmatpush1.msra.mxu0 0.0
        %884 = vmatprep.subr.mxu0 0.0
        %885 = vmatpush1.msra.mxu0 0.0
        %886 = vmatprep.subr.mxu0 0.0
        %887 = vmatpush1.msra.mxu0 0.0
        %888 = vmatprep.subr.mxu0 0.0
        %889 = vmatpush1.msra.mxu0 0.0
        %890 = vmatprep.subr.mxu0 0.0
        %891 = vmatpush1.msra.mxu0 0.0
        %892 = vmatprep.subr.mxu0 0.0
        %893 = vmatpush1.msra.mxu0 0.0
        %894 = vmatprep.subr.mxu0 0.0
        %895 = vmatpush1.msra.mxu0 0.0
        %896 = vmatprep.subr.mxu0 0.0
        %897 = vmatpush1.msra.mxu0 0.0
        %898 = vmatprep.subr.mxu0 0.0
        %899 = vmatpush1.msra.mxu0 0.0
        %900 = vmatprep.subr.mxu0 0.0
        %901 = vmatpush1.msra.mxu0 0.0
        %902 = vmatprep.subr.mxu0 0.0
        %903 = vmatpush1.msra.mxu0 0.0
        %904 = vmatprep.subr.mxu0 0.0
        %905 = vmatpush1.msra.mxu0 0.0
        %906 = vmatprep.subr.mxu0 0.0
        %907 = vmatpush1.msra.mxu0 0.0
        %908 = vmatprep.subr.mxu0 0.0
        %909 = vmatpush1.msra.mxu0 0.0
        %910 = vmatprep.subr.mxu0 0.0
        %911 = vmatpush1.msra.mxu0 0.0
        %912 = vmatprep.subr.mxu0 0.0
        %913 = vmatpush1.msra.mxu0 0.0
        %914 = vmatprep.subr.mxu0 0.0
        %915 = vmatpush1.msra.mxu0 0.0
        %916 = vmatprep.subr.mxu0 0.0
        %917 = vmatpush1.msra.mxu0 0.0
        %918 = vmatprep.subr.mxu0 0.0
        %919 = vmatpush1.msra.mxu0 0.0
        %920 = vmatprep.subr.mxu0 0.0
        %921 = vmatpush1.msra.mxu0 0.0
        %922 = vmatprep.subr.mxu0 0.0
        %923 = vmatpush1.msra.mxu0 0.0
        %924 = vmatprep.subr.mxu0 0.0
        %925 = vmatpush1.msra.mxu0 0.0
        %926 = vmatprep.subr.mxu0 0.0
        %927 = vmatpush1.msra.mxu0 0.0
        %928 = vmatprep.subr.mxu0 0.0
        %929 = vmatpush1.msra.mxu0 0.0
        %930 = vmatprep.subr.mxu0 0.0
        %931 = vmatpush1.msra.mxu0 0.0
        %932 = vmatprep.mubr.f32.mxu0 0.0
        %933 = vmatmul.mubr.f32.gmra.mrb[0].mxu0 %v866
        %v934 = vpop.f32.mrb[0].mxu0
        %v935 = vadd.f32 %v863, %v934
        %v936 = vpop.f32.mrb[0].mxu0
        %937 = vdwg.mxu0
        %938 = vst [vmem:[%s326] sm:$0xff] %v935
        %s939 = sand.u32 %s225, 1
        %s940 = scalar_lea.sflag [#allocation3], %s939
        %s941 = sand.u32 %s225, 1
        %s942 = smul.addr %s941, 8
        %s943 = scalar_lea.vmem [#allocation2], %s942
        // Predicated region
        $region57: #{tpu_custom_call.1} parent=55 // pred_check
          %p944 = pneg %p235
        $region58: #{tpu_custom_call.1} parent=55 // pred_check_branch
          %946 = sbr.rel (%p944) target = $region60
        $region59: #{tpu_custom_call.1} parent=55 // pred_region
          %s948 = ssub.s32 128, 128
          %949 = vsyncadd %s940, %s948
          %s950 = smul.addr %s23, 128
          %s951 = scalar_lea.hbm %s9, %s950
          %s953 = sshll.u32 %s943, 4
          %s954 = int_to_ptr.vmem [resolvable:$true] %s953
          %956 = dma.vmem_to_hbm [thread:$0]  %s954, 128, %s951, %s940
        $region60: #{tpu_custom_call.1} parent=55 // pred_fallthru
          _
      $region56: #{tpu_custom_call.1} parent=5 // pred_fallthru
        _
      %p957 = scmp.le.s32.totalorder 2, %s18
      // Predicated region
      $region61: #{tpu_custom_call.1} parent=5 // pred_check
        %p958 = pneg %p957
      $region62: #{tpu_custom_call.1} parent=5 // pred_check_branch
        %960 = sbr.rel (%p958) target = $region64
      $region63: #{tpu_custom_call.1} parent=5 // pred_region
        %s961 = ssub.s32 %s18, 2
        // Predicated region
        $region65: #{tpu_custom_call.1} parent=63 // pred_check
          %p962 = pneg %p241
        $region66: #{tpu_custom_call.1} parent=63 // pred_check_branch
          %964 = sbr.rel (%p962) target = $region68
        $region67: #{tpu_custom_call.1} parent=63 // pred_region
          %s965 = sand.u32 %s226, 1
          %s966 = scalar_lea.sflag [#allocation3], %s965
          %s967 = sand.u32 %s226, 1
          %s968 = smul.addr %s967, 8
          %s969 = scalar_lea.vmem [#allocation2], %s968
          %970 = dma.done %s966, 128
        $region68: #{tpu_custom_call.1} parent=63 // pred_fallthru
          _
      $region64: #{tpu_custom_call.1} parent=5 // pred_fallthru
        _
    $region6: #{tpu_custom_call.1} parent=1 // loop_footer
      %s22 = sadd.s32 1, %s18
    $region7: #{tpu_custom_call.1} parent=1 // loop_footer_branch
      %17 = sbr.rel target = $region3
    $region8: #{tpu_custom_call.1} parent=1 // loop_exit
      _
    %971 = vsyncpa [#allocation3], 1
    %s972 = scalar_lea.sflag [#allocation3], 1
    %973 = vsyncpa %s972, 1

</llo_original>
